<compile_context>
chip_gen: v5e
topology: v5e:2x2
jax: 0.10.0
libtpu: 0.0.40
codegen_flags: <defaults>
</compile_context>

<pallas_src>
import functools

import jax
import jax.numpy as jnp
from jax.experimental import pallas as pl
from jax.experimental.pallas import tpu as pltpu

LANES = 128
TARGET_BLOCK_BYTES = 2 * 1024 * 1024   # ~2 MiB per input per grid step (85%+ roofline)


def _sq_diff_sum_kernel(n_elements, blocks_total, est_ref, tgt_ref, out_ref, acc_ref):
    """Accumulates sum((est - tgt)^2) over the inner ('arbitrary') grid axis.

    Grid = (num_parts, blocks_per_part).  Each partition writes one (1, 128) row of
    lane-wise partial sums; the wrapper reduces rows and divides by n_elements.
    """
    c = pl.program_id(0)                 # core-partition index (parallel axis)
    i = pl.program_id(1)                 # block index within the partition
    n_inner = pl.num_programs(1)

    @pl.when(i == 0)
    def _():
        acc_ref[...] = jnp.zeros_like(acc_ref)

    block_rows, lanes = est_ref.shape
    block_elems = block_rows * lanes
    strips = block_rows // 8
    block_idx = c * n_inner + i          # nominal (unclamped) block index

    e = est_ref[...].astype(jnp.float32)
    t = tgt_ref[...].astype(jnp.float32)
    d = e - t
    sq = d * d

    # Fast path: full interior block -> no mask, pure strip-sum of sublane slabs.
    @pl.when(block_idx < blocks_total - 1)
    def _():
        acc_ref[...] += jnp.sum(sq.reshape(strips, 8, lanes), axis=0)

    # Slow path: last real block (possibly partial) and clamped duplicate blocks.
    # Flat-index mask zeroes lane padding, out-of-bounds rows of the edge block,
    # and fully masks clamped blocks (their start offset is >= n_elements).
    @pl.when(block_idx >= blocks_total - 1)
    def _():
        start = block_idx * block_elems
        row = jax.lax.broadcasted_iota(jnp.int32, (block_rows, lanes), 0)
        lane = jax.lax.broadcasted_iota(jnp.int32, (block_rows, lanes), 1)
        flat = start + row * lanes + lane
        sq_m = jnp.where(flat < n_elements, sq, 0.0)
        acc_ref[...] += jnp.sum(sq_m.reshape(strips, 8, lanes), axis=0)

    @pl.when(i == n_inner - 1)
    def _():
        # Single tiny cross-sublane reduce per partition -> lane-wise partial sums.
        out_ref[...] = jnp.sum(acc_ref[...], axis=0, keepdims=True)


def _num_tensorcores_per_chip() -> int:
    """2 on v7x (megacore sharding of the outer grid axis), else 1."""
    try:
        kind = jax.devices()[0].device_kind.lower()
    except Exception:
        return 1
    return 2 if ("v7" in kind or "7x" in kind) else 1


def edm_loss(estimate: jax.Array, target: jax.Array,
             target_block_bytes: int = TARGET_BLOCK_BYTES) -> jax.Array:
    """MSE loss (mean reduction) computed in a Pallas TPU kernel. Returns scalar f32."""
    assert estimate.shape == target.shape, "estimate/target shapes must match"
    n_elements = int(estimate.size)
    assert n_elements > 0
    # Flat-index masking is done in int32 inside the kernel (with block-size margin).
    assert n_elements < 2**31 - 2**22, "element count must fit in int32"

    itemsize = jnp.dtype(estimate.dtype).itemsize
    # Sublane granule for full packing: 8 rows for 4-byte, 16 for 2-byte, 32 for 1-byte.
    granule = 8 if itemsize >= 4 else (16 if itemsize == 2 else 32)
    # Byte-sized block: ~2 MiB per input per step (4096 rows f32 / 8192 rows bf16).
    target_rows = max(granule, (target_block_bytes // (LANES * itemsize)) // granule * granule)

    est = estimate.reshape(-1)
    tgt = target.reshape(-1)

    rows = -(-n_elements // LANES)            # ceil: rows of the lane-dense 2D view
    rows_padded = max(rows, granule)          # tiny inputs: pad up to one granule
    pad_elems = rows_padded * LANES - n_elements
    if pad_elems:
        # Only pads when the flat length is not lane-aligned (or input is tiny); the
        # common case (size % 128 == 0, >= granule rows) is a pure reshape: no copy.
        est = jnp.pad(est, (0, pad_elems))
        tgt = jnp.pad(tgt, (0, pad_elems))
    est2d = est.reshape(rows_padded, LANES)
    tgt2d = tgt.reshape(rows_padded, LANES)

    block_rows = min(target_rows, (rows_padded // granule) * granule)
    blocks_total = -(-rows_padded // block_rows)             # ceil

    # Shard the reduction across TensorCores only where there is more than one.
    num_parts = min(_num_tensorcores_per_chip(), blocks_total)
    blocks_per_part = -(-blocks_total // num_parts)           # ceil

    def in_index_map(c, i):
        # Clamp so the DMA source stays in range; clamped duplicate blocks are fully
        # masked in-kernel (their nominal flat offset is >= n_elements).
        return (jnp.minimum(c * blocks_per_part + i, blocks_total - 1), 0)

    cost = pl.CostEstimate(
        flops=3 * n_elements,
        transcendentals=0,
        bytes_accessed=2 * n_elements * itemsize,
    )

    # TODO(synk): verify on v7x (xprof per-core occupancy) that the size-2 "parallel"
    # outer axis really shards across both TensorCores; if not, switch that axis to
    # pltpu.CORE_PARALLEL.
    out = pl.pallas_call(
        functools.partial(_sq_diff_sum_kernel, n_elements, blocks_total),
        out_shape=jax.ShapeDtypeStruct((num_parts, LANES), jnp.float32),
        grid_spec=pltpu.PrefetchScalarGridSpec(
            num_scalar_prefetch=0,
            grid=(num_parts, blocks_per_part),
            in_specs=[
                pl.BlockSpec((block_rows, LANES), in_index_map),
                pl.BlockSpec((block_rows, LANES), in_index_map),
            ],
            out_specs=pl.BlockSpec((1, LANES), lambda c, i: (c, 0)),
            # Accumulator decoupled from block size: one vreg (8, 128) f32.
            scratch_shapes=[pltpu.VMEM((8, LANES), jnp.float32)],
        ),
        compiler_params=pltpu.CompilerParams(
            dimension_semantics=("parallel", "arbitrary"),
        ),
        cost_estimate=cost,
    )(est2d, tgt2d)

    # Final tiny reduction + mean normalization in the wrapper.
    return jnp.sum(out) / jnp.float32(n_elements)


def _ref_mse(e, t):
    return jnp.mean((e.astype(jnp.float32) - t.astype(jnp.float32)) ** 2)


if __name__ == "__main__":
    key = jax.random.PRNGKey(0)

    # 1) Small NCHW f32 case (size % 128 == 0 -> no pad, single block).
    k1, k2, key = jax.random.split(key, 3)
    shape = (2, 4, 16, 16)
    est = jax.random.normal(k1, shape, dtype=jnp.float32)
    tgt = jax.random.normal(k2, shape, dtype=jnp.float32)
    loss = edm_loss(est, tgt)
    jax.block_until_ready(loss)
    assert jnp.allclose(loss, _ref_mse(est, tgt), rtol=1e-4, atol=1e-6), "case1"

    # 2) Ragged size (exercises lane padding + in-kernel tail masking).
    k1, k2, key = jax.random.split(key, 3)
    est = jax.random.normal(k1, (3, 5, 7, 11), dtype=jnp.float32)
    tgt = jax.random.normal(k2, (3, 5, 7, 11), dtype=jnp.float32)
    loss = edm_loss(est, tgt)
    jax.block_until_ready(loss)
    assert jnp.allclose(loss, _ref_mse(est, tgt), rtol=1e-4, atol=1e-6), "case2"

    # 3) Multi-block case (small block size forced to exercise the pipelined grid,
    #    a partial edge block, and clamped-block masking when num_parts == 2).
    k1, k2, key = jax.random.split(key, 3)
    est = jax.random.normal(k1, (4, 4, 64, 66), dtype=jnp.float32)
    tgt = jax.random.normal(k2, (4, 4, 64, 66), dtype=jnp.float32)
    loss = edm_loss(est, tgt, target_block_bytes=64 * 1024)
    jax.block_until_ready(loss)
    assert jnp.allclose(loss, _ref_mse(est, tgt), rtol=1e-4, atol=1e-6), "case3"

    # 4) bf16 inputs pass straight through (f32 accumulation inside the kernel).
    k1, k2, key = jax.random.split(key, 3)
    est = jax.random.normal(k1, (2, 4, 16, 16), dtype=jnp.bfloat16)
    tgt = jax.random.normal(k2, (2, 4, 16, 16), dtype=jnp.bfloat16)
    loss = edm_loss(est, tgt)
    jax.block_until_ready(loss)
    assert jnp.allclose(loss, _ref_mse(est, tgt), rtol=1e-3, atol=1e-5), "case4"

    print("KERNEL_OK")
</pallas_src>

<mosaic_0001>
module attributes {stable_mosaic.version = 11 : i64} {
  func.func @_sq_diff_sum_kernel(%arg0: i32, %arg1: i32, %arg2: memref<16x128xf32, #tpu.memory_space<vmem>>, %arg3: memref<16x128xf32, #tpu.memory_space<vmem>>, %arg4: memref<1x128xf32, #tpu.memory_space<vmem>>, %arg5: memref<8x128xf32, #tpu.memory_space<vmem>>) attributes {dimension_semantics = [#tpu.dimension_semantics<parallel>, #tpu.dimension_semantics<arbitrary>], iteration_bounds = array<i64: 1, 1>, scalar_prefetch = 0 : i64, scratch_operands = 1 : i64, tpu.core_type = #tpu.core_type<tc>, window_params = [{transform_indices = @transform_0, window_bounds = array<i64: 16, 128>}, {transform_indices = @transform_1, window_bounds = array<i64: 16, 128>}, {transform_indices = @transform_2, window_bounds = array<i64: 1, 128>}]} {
    %c0_i32 = arith.constant 0 : i32
    %0 = arith.cmpi eq, %arg1, %c0_i32 : i32
    %1 = arith.extui %0 : i1 to i32
    %c0_i32_0 = arith.constant 0 : i32
    %2 = arith.cmpi ne, %1, %c0_i32_0 : i32
    scf.if %2 {
      %cst = arith.constant 0.000000e+00 : f32
      %18 = vector.broadcast %cst : f32 to vector<8x128xf32>
      %c0_10 = arith.constant 0 : index
      %c0_11 = arith.constant 0 : index
      %19 = vector.load %arg5[%c0_10, %c0_11] : memref<8x128xf32, #tpu.memory_space<vmem>>, vector<8x128xf32>
      tpu.vector_store %arg5[%c0_10, %c0_11], %18 {strides = array<i32>} : memref<8x128xf32, #tpu.memory_space<vmem>>, vector<8x128xf32>,
    } else {
    }
    %c1_i32 = arith.constant 1 : i32
    %3 = arith.muli %arg0, %c1_i32 : i32
    %4 = arith.addi %3, %arg1 : i32
    %c0 = arith.constant 0 : index
    %c0_1 = arith.constant 0 : index
    %5 = vector.load %arg2[%c0, %c0_1] : memref<16x128xf32, #tpu.memory_space<vmem>>, vector<16x128xf32>
    %c0_2 = arith.constant 0 : index
    %c0_3 = arith.constant 0 : index
    %6 = vector.load %arg3[%c0_2, %c0_3] : memref<16x128xf32, #tpu.memory_space<vmem>>, vector<16x128xf32>
    %7 = arith.subf %5, %6 : vector<16x128xf32>
    %8 = arith.mulf %7, %7 : vector<16x128xf32>
    %c0_i32_4 = arith.constant 0 : i32
    %9 = arith.cmpi slt, %4, %c0_i32_4 : i32
    %10 = arith.extui %9 : i1 to i32
    %c0_i32_5 = arith.constant 0 : i32
    %11 = arith.cmpi ne, %10, %c0_i32_5 : i32
    scf.if %11 {
      %c0_10 = arith.constant 0 : index
      %c0_11 = arith.constant 0 : index
      %18 = vector.load %arg5[%c0_10, %c0_11] : memref<8x128xf32, #tpu.memory_space<vmem>>, vector<8x128xf32>
      %19 = vector.shape_cast %8 : vector<16x128xf32> to vector<2x8x128xf32>
      %cst = arith.constant dense<0.000000e+00> : vector<8x128xf32>
      %20 = vector.multi_reduction <add>, %19, %cst [0] : vector<2x8x128xf32> to vector<8x128xf32>
      %21 = arith.addf %18, %20 : vector<8x128xf32>
      %c0_12 = arith.constant 0 : index
      %c0_13 = arith.constant 0 : index
      %22 = vector.load %arg5[%c0_12, %c0_13] : memref<8x128xf32, #tpu.memory_space<vmem>>, vector<8x128xf32>
      tpu.vector_store %arg5[%c0_12, %c0_13], %21 {strides = array<i32>} : memref<8x128xf32, #tpu.memory_space<vmem>>, vector<8x128xf32>,
    } else {
    }
    %c0_i32_6 = arith.constant 0 : i32
    %12 = arith.cmpi sge, %4, %c0_i32_6 : i32
    %13 = arith.extui %12 : i1 to i32
    %c0_i32_7 = arith.constant 0 : i32
    %14 = arith.cmpi ne, %13, %c0_i32_7 : i32
    scf.if %14 {
      %c2048_i32 = arith.constant 2048 : i32
      %18 = arith.muli %4, %c2048_i32 : i32
      %19 = tpu.iota {dimensions = array<i32: 0>} : vector<16x128xi32>
      %20 = tpu.iota {dimensions = array<i32: 1>} : vector<16x128xi32>
      %c128_i32 = arith.constant 128 : i32
      %21 = vector.broadcast %c128_i32 : i32 to vector<16x128xi32>
      %22 = arith.muli %19, %21 : vector<16x128xi32>
      %23 = vector.broadcast %18 : i32 to vector<16x128xi32>
      %24 = arith.addi %23, %22 : vector<16x128xi32>
      %25 = arith.addi %24, %20 : vector<16x128xi32>
      %c2048_i32_10 = arith.constant 2048 : i32
      %26 = vector.broadcast %c2048_i32_10 : i32 to vector<16x128xi32>
      %27 = arith.cmpi slt, %25, %26 : vector<16x128xi32>
      %cst = arith.constant 0.000000e+00 : f32
      %28 = vector.broadcast %cst : f32 to vector<16x128xf32>
      %29 = arith.select %27, %8, %28 : vector<16x128xi1>, vector<16x128xf32>
      %c0_11 = arith.constant 0 : index
      %c0_12 = arith.constant 0 : index
      %30 = vector.load %arg5[%c0_11, %c0_12] : memref<8x128xf32, #tpu.memory_space<vmem>>, vector<8x128xf32>
      %31 = vector.shape_cast %29 : vector<16x128xf32> to vector<2x8x128xf32>
      %cst_13 = arith.constant dense<0.000000e+00> : vector<8x128xf32>
      %32 = vector.multi_reduction <add>, %31, %cst_13 [0] : vector<2x8x128xf32> to vector<8x128xf32>
      %33 = arith.addf %30, %32 : vector<8x128xf32>
      %c0_14 = arith.constant 0 : index
      %c0_15 = arith.constant 0 : index
      %34 = vector.load %arg5[%c0_14, %c0_15] : memref<8x128xf32, #tpu.memory_space<vmem>>, vector<8x128xf32>
      tpu.vector_store %arg5[%c0_14, %c0_15], %33 {strides = array<i32>} : memref<8x128xf32, #tpu.memory_space<vmem>>, vector<8x128xf32>,
    } else {
    }
    %c0_i32_8 = arith.constant 0 : i32
    %15 = arith.cmpi eq, %arg1, %c0_i32_8 : i32
    %16 = arith.extui %15 : i1 to i32
    %c0_i32_9 = arith.constant 0 : i32
    %17 = arith.cmpi ne, %16, %c0_i32_9 : i32
    scf.if %17 {
      %c0_10 = arith.constant 0 : index
      %c0_11 = arith.constant 0 : index
      %18 = vector.load %arg5[%c0_10, %c0_11] : memref<8x128xf32, #tpu.memory_space<vmem>>, vector<8x128xf32>
      %cst = arith.constant dense<0.000000e+00> : vector<128xf32>
      %19 = vector.multi_reduction <add>, %18, %cst [0] : vector<8x128xf32> to vector<128xf32>
      %20 = vector.shape_cast %19 : vector<128xf32> to vector<1x128xf32>
      %c0_12 = arith.constant 0 : index
      %c0_13 = arith.constant 0 : index
      %21 = vector.load %arg4[%c0_12, %c0_13] : memref<1x128xf32, #tpu.memory_space<vmem>>, vector<1x128xf32>
      tpu.vector_store %arg4[%c0_12, %c0_13], %20 {strides = array<i32>} : memref<1x128xf32, #tpu.memory_space<vmem>>, vector<1x128xf32>,
    } else {
    }
    return
  }
  func.func @transform_0(%arg0: i32, %arg1: i32) -> (i32, i32) {
    %c1_i32 = arith.constant 1 : i32
    %0 = arith.muli %arg0, %c1_i32 : i32
    %1 = arith.addi %0, %arg1 : i32
    %c0_i32 = arith.constant 0 : i32
    %2 = arith.minsi %1, %c0_i32 : i32
    %c0_i32_0 = arith.constant 0 : i32
    %c0_i32_1 = arith.constant 0 : i32
    return %2, %c0_i32_0 : i32, i32
  }
  func.func @transform_1(%arg0: i32, %arg1: i32) -> (i32, i32) {
    %c1_i32 = arith.constant 1 : i32
    %0 = arith.muli %arg0, %c1_i32 : i32
    %1 = arith.addi %0, %arg1 : i32
    %c0_i32 = arith.constant 0 : i32
    %2 = arith.minsi %1, %c0_i32 : i32
    %c0_i32_0 = arith.constant 0 : i32
    %c0_i32_1 = arith.constant 0 : i32
    return %2, %c0_i32_0 : i32, i32
  }
  func.func @transform_2(%arg0: i32, %arg1: i32) -> (i32, i32) {
    %c0_i32 = arith.constant 0 : i32
    %c0_i32_0 = arith.constant 0 : i32
    return %arg0, %c0_i32 : i32, i32
  }
}

</mosaic_0001>

<llo_original>
// kernel: tpu_custom_call.1
$region0: #{tpu_custom_call.1}
  #allocation0 [shape = 'u32[]', space=smem, size = 0x4, offset = 0x4, fixed_abs, tag = 'smem constant byte address 0x4 - core index']
  #allocation1 [shape = 'u32[72,128]{1,0:T(1,128)}', space=vmem, size = 0x9000, scoped, tag = 'internal scratch']
  #allocation2 [shape = 'f32[8,128]{1,0:T(8,128)}', space=vmem, size = 0x1000, scoped, tag = 'scratch operand']
  %s0 = inlined_call_operand.hbm [shape: f32[16,128], index: 0, kind: input, shape index: {}]
  %s1 = inlined_call_operand.hbm [shape: f32[16,128], index: 1, kind: input, shape index: {}]
  %s2 = inlined_call_operand.hbm [shape: f32[1,128], index: 2, kind: output, shape index: {}]
  %s3 = sld [smem:[#allocation0]]
  $region42: #{tpu_custom_call.1} parent=0
    _
  %s5 = ssub.s32 1, %s3
  %s6 = scalar_select 0, %s5, %s3
  $region1: #{tpu_custom_call.1} parent=0
    #allocation3 [shape = 'u8[8192]{0}', space=vmem, size = 0x2000, scoped, tag = 'input window, operand 0, single buffered']
    #allocation4 [shape = 's32[1]{0}', space=sflag, size = 0x4, scoped, tag = 'scoped memory for tpu_custom_call.1']
    #allocation5 [shape = 's32[1]{0}', space=sflag, size = 0x4, scoped, tag = 'scoped memory for tpu_custom_call.1']
    #allocation6 [shape = 'u8[8192]{0}', space=vmem, size = 0x2000, scoped, tag = 'input window, operand 1, single buffered']
    #allocation7 [shape = 's32[1]{0}', space=sflag, size = 0x4, scoped, tag = 'scoped memory for tpu_custom_call.1']
    #allocation8 [shape = 'u8[512]{0}', space=vmem, size = 0x400, scoped, tag = 'output window, operand 0, single buffered']
    %7 = vsyncpa [#allocation4], 0
    %8 = vsyncpa [#allocation7], 0
    %9 = vsyncpa [#allocation5], 0
    // Predicated region
    $region2: #{tpu_custom_call.1} parent=1 // pred_check
      _
    $region3: #{tpu_custom_call.1} parent=1 // pred_check_branch
      %11 = sbr.rel (0) target = $region5
    $region4: #{tpu_custom_call.1} parent=1 // pred_region
      %s12 = sadd.s32 0, 0
      %p13 = scmp.lt.s32.totalorder %s12, 0
      %s14 = scalar_select %p13, %s12, 0
      %s15 = smul.u32 2, %s14
      %17 = vsyncadd [#allocation4], 0
      %s18 = smul.addr %s15, 8
      %s19 = scalar_lea.hbm %s0, %s18
      %s20 = sshll.u32 %s19, 4
      %s21 = int_to_ptr.hbm [resolvable:$true] %s20
      %s22 = sshll.u32 [#allocation3], 4
      %s23 = int_to_ptr.vmem [resolvable:$true] %s22
      %28 = dma.hbm_to_vmem [thread:$0]  %s21, 256, %s23, [#allocation4], 128, 128, 8
    $region5: #{tpu_custom_call.1} parent=1 // pred_fallthru
      _
    // Predicated region
    $region6: #{tpu_custom_call.1} parent=1 // pred_check
      _
    $region7: #{tpu_custom_call.1} parent=1 // pred_check_branch
      %30 = sbr.rel (0) target = $region9
    $region8: #{tpu_custom_call.1} parent=1 // pred_region
      %s31 = sadd.s32 0, 0
      %p32 = scmp.lt.s32.totalorder %s31, 0
      %s33 = scalar_select %p32, %s31, 0
      %s34 = smul.u32 2, %s33
      %36 = vsyncadd [#allocation7], 0
      %s37 = smul.addr %s34, 8
      %s38 = scalar_lea.hbm %s1, %s37
      %s39 = sshll.u32 %s38, 4
      %s40 = int_to_ptr.hbm [resolvable:$true] %s39
      %s41 = sshll.u32 [#allocation6], 4
      %s42 = int_to_ptr.vmem [resolvable:$true] %s41
      %47 = dma.hbm_to_vmem [thread:$0]  %s40, 256, %s42, [#allocation7], 128, 128, 8
    $region9: #{tpu_custom_call.1} parent=1 // pred_fallthru
      _
    // Predicated region
    $region10: #{tpu_custom_call.1} parent=1 // pred_check
      _
    $region11: #{tpu_custom_call.1} parent=1 // pred_check_branch
      %49 = sbr.rel (0) target = $region13
    $region12: #{tpu_custom_call.1} parent=1 // pred_region
      %51 = dma.done [#allocation4], 256
    $region13: #{tpu_custom_call.1} parent=1 // pred_fallthru
      _
    // Predicated region
    $region14: #{tpu_custom_call.1} parent=1 // pred_check
      _
    $region15: #{tpu_custom_call.1} parent=1 // pred_check_branch
      %53 = sbr.rel (0) target = $region17
    $region16: #{tpu_custom_call.1} parent=1 // pred_region
      %55 = dma.done [#allocation7], 256
    $region17: #{tpu_custom_call.1} parent=1 // pred_fallthru
      _
    %s56 = sadd.s32 0, 0
    %p57 = scmp.lt.s32.totalorder %s56, 0
    %s58 = scalar_select %p57, %s56, 0
    %s59 = smul.u32 2, %s58
    %s60 = sadd.s32 0, 0
    %p61 = scmp.lt.s32.totalorder %s60, 0
    %s62 = scalar_select %p61, %s60, 0
    %s63 = smul.u32 2, %s62
    %p64 = scmp.eq.s32.totalorder 0, 0
    // Predicated region
    $region18: #{tpu_custom_call.1} parent=1 // pred_check
      %p65 = pneg %p64
    $region19: #{tpu_custom_call.1} parent=1 // pred_check_branch
      %67 = sbr.rel (%p65) target = $region21
    $region20: #{tpu_custom_call.1} parent=1 // pred_region
      %68 = vst [vmem:[#allocation2] sm:$0xff] 0.0
    $region21: #{tpu_custom_call.1} parent=1 // pred_fallthru
      _
    %s69 = sadd.s32 0, 0
    %v70 = vld [vmem:[#allocation3] sm:$0xff]
    %v71 = vld [vmem:[#allocation3 + $0x8] sm:$0xff]
    %v72 = vld [vmem:[#allocation6] sm:$0xff]
    %v73 = vld [vmem:[#allocation6 + $0x8] sm:$0xff]
    %v74 = vsub.f32 %v70, %v72
    %v75 = vsub.f32 %v71, %v73
    %v76 = vmul.f32 %v74, %v74
    %v77 = vmul.f32 %v75, %v75
    %p78 = scmp.lt.s32.totalorder %s69, 0
    // Predicated region
    $region22: #{tpu_custom_call.1} parent=1 // pred_check
      %p79 = pneg %p78
    $region23: #{tpu_custom_call.1} parent=1 // pred_check_branch
      %81 = sbr.rel (%p79) target = $region25
    $region24: #{tpu_custom_call.1} parent=1 // pred_region
      %v82 = vld [vmem:[#allocation2] sm:$0xff]
      %v83 = vadd.f32 %v76, %v77
      %v84 = vadd.f32 %v82, %v83
      %85 = vst [vmem:[#allocation2] sm:$0xff] %v84
    $region25: #{tpu_custom_call.1} parent=1 // pred_fallthru
      _
    %p86 = scmp.ge.s32.totalorder %s69, 0
    // Predicated region
    $region26: #{tpu_custom_call.1} parent=1 // pred_check
      %p87 = pneg %p86
    $region27: #{tpu_custom_call.1} parent=1 // pred_check_branch
      %89 = sbr.rel (%p87) target = $region29
    $region28: #{tpu_custom_call.1} parent=1 // pred_region
      %s90 = smul.u32 %s69, 2048
      %v91 = vlaneseq
      %v92 = vshrl.u32 %v91, 7
      %v93 = vadd.s32 %v92, 8
      %v94 = vlaneseq
      %v95 = vand.u32 %v94, 127
      %v96 = vmul.u32 %v92, 128
      %v97 = vmul.u32 %v93, 128
      %v98 = vstv %s90
      %v99 = vadd.s32 %v98, %v96
      %v100 = vadd.s32 %v98, %v97
      %v101 = vadd.s32 %v99, %v95
      %v102 = vadd.s32 %v100, %v95
      %vm103 = vcmp.lt.s32.totalorder %v101, 2048
      %vm104 = vcmp.lt.s32.totalorder %v102, 2048
      %v105 = vsel %vm103, %v76, 0.0
      %v106 = vsel %vm104, %v77, 0.0
      %v107 = vld [vmem:[#allocation2] sm:$0xff]
      %v108 = vadd.f32 %v105, %v106
      %v109 = vadd.f32 %v107, %v108
      %110 = vst [vmem:[#allocation2] sm:$0xff] %v109
    $region29: #{tpu_custom_call.1} parent=1 // pred_fallthru
      _
    // Predicated region
    $region30: #{tpu_custom_call.1} parent=1 // pred_check
      %p111 = pneg %p64
    $region31: #{tpu_custom_call.1} parent=1 // pred_check_branch
      %113 = sbr.rel (%p111) target = $region33
    $region32: #{tpu_custom_call.1} parent=1 // pred_region
      %v114 = vld [vmem:[#allocation2] sm:$0xff]
      %v115 = vrot.slane %v114, 4
      %v116 = vadd.f32 %v114, %v115
      %v117 = vrot.slane %v116, 2
      %v118 = vadd.f32 %v116, %v117
      %v119 = vrot.slane %v118, 1
      %v120 = vadd.f32 %v118, %v119
      %121 = vst [vmem:[#allocation8] sm:$0x1] %v120
    $region33: #{tpu_custom_call.1} parent=1 // pred_fallthru
      _
    // Predicated region
    $region34: #{tpu_custom_call.1} parent=1 // pred_check
      _
    $region35: #{tpu_custom_call.1} parent=1 // pred_check_branch
      %123 = sbr.rel (0) target = $region37
    $region36: #{tpu_custom_call.1} parent=1 // pred_region
      %125 = vsyncadd [#allocation5], 0
      %s127 = sshll.u32 [#allocation8], 4
      %s128 = int_to_ptr.vmem [resolvable:$true] %s127
      %s129 = sshll.u32 %s2, 4
      %s130 = int_to_ptr.hbm [resolvable:$true] %s129
      %132 = dma.vmem_to_hbm [thread:$0]  %s128, 16, %s130, [#allocation5]
    $region37: #{tpu_custom_call.1} parent=1 // pred_fallthru
      _
    // Predicated region
    $region38: #{tpu_custom_call.1} parent=1 // pred_check
      _
    $region39: #{tpu_custom_call.1} parent=1 // pred_check_branch
      %134 = sbr.rel (0) target = $region41
    $region40: #{tpu_custom_call.1} parent=1 // pred_region
      %136 = dma.done [#allocation5], 16
    $region41: #{tpu_custom_call.1} parent=1 // pred_fallthru
      _
    %137 = vsyncpa [#allocation4], 1
    %138 = vsyncpa [#allocation7], 1
    %139 = vsyncpa [#allocation5], 1

</llo_original>
